<compile_context>
chip_gen: v7x
topology: tpu7x:2x2x1
jax: 0.10.0
libtpu: 0.0.40
codegen_flags: <defaults>
</compile_context>

<pallas_src>
import functools

import numpy as np
import jax
import jax.numpy as jnp
from jax.experimental import pallas as pl
from jax.experimental.pallas import tpu as pltpu

_MXU_LANE = 128
_M_VMEM_BUDGET = 24 * 1024 * 1024  # bf16 kron tiles incl. double-buffering (v7x-safe)


def _aux_head_kernel(x_ref, w_ref, m_ref, o_ref, *, resize_first):
    # x_ref: (K, hw_in)  bf16   K = N*Cin + 1 (last row = ones -> carries bias)
    # w_ref: (R_pad, K)  bf16   block-diag conv weight + bias column, zero-padded rows
    # m_ref: (hw_in, T)  bf16   lane tile of the kron'd bilinear resize matrix
    # o_ref: (R_pad, T)  f32
    if resize_first:
        # resize first: contraction hits the (smaller) input-channel dim first
        xm = jnp.dot(x_ref[...], m_ref[...], preferred_element_type=jnp.float32)
        out = jnp.dot(w_ref[...], xm.astype(w_ref.dtype),
                      preferred_element_type=jnp.float32)
    else:
        # conv first (production AuxHead: Cin >> num_classes)
        z = jnp.dot(w_ref[...], x_ref[...], preferred_element_type=jnp.float32)
        out = jnp.dot(z.astype(m_ref.dtype), m_ref[...],
                      preferred_element_type=jnp.float32)
    o_ref[...] = out.astype(o_ref.dtype)


def _bilinear_matrix_np(in_size, out_size):
    # Row-stochastic matrix matching F.interpolate(mode='bilinear',
    # align_corners=False), built host-side with numpy.
    i = np.arange(out_size, dtype=np.float64)
    src = (i + 0.5) * (in_size / out_size) - 0.5
    src = np.clip(src, 0.0, float(in_size - 1))
    i0 = np.floor(src).astype(np.int32)
    i1 = np.minimum(i0 + 1, in_size - 1)
    frac = (src - i0).astype(np.float32)
    m = np.zeros((out_size, in_size), np.float32)
    rows = np.arange(out_size)
    np.add.at(m, (rows, i0), 1.0 - frac)
    np.add.at(m, (rows, i1), frac)
    return m


@functools.lru_cache(maxsize=None)
def _resize_matrix_np(hin, win, hout, wout, hw_out_pad):
    # M[y*Win + x, a*Wout + b] = Wy[a, y] * Wx[b, x]  ->  out2d = z2d @ M
    wy = _bilinear_matrix_np(hin, hout)            # (hout, hin)
    wx = _bilinear_matrix_np(win, wout)            # (wout, win)
    m = np.kron(wy.T, wx.T)                        # (hin*win, hout*wout)
    if hw_out_pad > hout * wout:
        m = np.pad(m, ((0, 0), (0, hw_out_pad - hout * wout)))
    return m


def aux_head_forward(x_nchw, weight, bias, h, w):
    """weight: (Cout, Cin, 1, 1), bias: (Cout,). Returns NCHW (N, Cout, h, w)."""
    N, Cin, Hin, Win = x_nchw.shape
    Cout = weight.shape[0]
    hw_in, hw_out = Hin * Win, h * w

    R = N * Cout
    R_pad = -(-R // 8) * 8           # pad rows -> sublane-unmasked output stores
    K = N * Cin + 1                  # +1: ones row / bias column

    # ---- lane tiling of hw_out: bounds M's VMEM residency (v7x first) ------
    max_tile = (_M_VMEM_BUDGET // (4 * hw_in)) // _MXU_LANE * _MXU_LANE
    if max_tile < _MXU_LANE:
        # TODO(synk): switch to the separable Wy @ z @ WxT path for huge hw_in.
        raise ValueError("hw_in too large for the dense kron resize path")
    if hw_out <= max_tile:
        tile, hw_out_pad = hw_out, hw_out
    else:
        tile = max_tile
        hw_out_pad = -(-hw_out // tile) * tile
    num_tiles = hw_out_pad // tile

    # ---- operand prep (cheap; M is numpy-built and cached per size) --------
    w_bd = jnp.kron(jnp.eye(N, dtype=jnp.float32),
                    weight.reshape(Cout, Cin).astype(jnp.float32))   # (R, N*Cin)
    b_col = jnp.tile(bias.astype(jnp.float32), N).reshape(R, 1)
    w_aug = jnp.concatenate([w_bd, b_col], axis=1)                   # (R, K)
    if R_pad > R:
        w_aug = jnp.pad(w_aug, ((0, R_pad - R), (0, 0)))
    w_aug = w_aug.astype(jnp.bfloat16)

    x_flat = x_nchw.reshape(N * Cin, hw_in).astype(jnp.float32)
    x_aug = jnp.concatenate(
        [x_flat, jnp.ones((1, hw_in), jnp.float32)], axis=0).astype(jnp.bfloat16)

    m_bf16 = jnp.asarray(_resize_matrix_np(Hin, Win, h, w, hw_out_pad),
                         jnp.bfloat16)                               # (hw_in, hw_out_pad)

    # ---- matmul-order switch: contract the smaller channel dim first -------
    resize_first = K < R_pad
    if resize_first:
        flops = 2 * K * hw_in * hw_out_pad + 2 * R_pad * K * hw_out_pad
    else:
        flops = 2 * R_pad * K * hw_in + 2 * R_pad * hw_in * hw_out_pad
    bytes_accessed = int(2 * (K * hw_in + R_pad * K + hw_in * hw_out_pad)
                         + 4 * R_pad * hw_out_pad)

    per_step_bytes = (2 * hw_in * tile * 2      # M tile (bf16, double-buffered)
                      + 2 * R_pad * tile * 4    # out tile (f32, double-buffered)
                      + 2 * K * hw_in * 2       # x (resident, constant index)
                      + 2 * R_pad * K * 2)      # W (resident, constant index)
    vmem_limit = int(min(max(2 * per_step_bytes, 16 * 1024 * 1024),
                         48 * 1024 * 1024))

    kernel = functools.partial(_aux_head_kernel, resize_first=resize_first)

    out_pad = pl.pallas_call(
        kernel,
        out_shape=jax.ShapeDtypeStruct((R_pad, hw_out_pad), jnp.float32),
        grid=(num_tiles,),
        in_specs=[
            pl.BlockSpec((K, hw_in), lambda j: (0, 0)),
            pl.BlockSpec((R_pad, K), lambda j: (0, 0)),
            pl.BlockSpec((hw_in, tile), lambda j: (0, j)),
        ],
        out_specs=pl.BlockSpec((R_pad, tile), lambda j: (0, j)),
        compiler_params=pltpu.CompilerParams(
            dimension_semantics=("parallel",),   # hw_out tiles -> both TCs on v7x
            vmem_limit_bytes=vmem_limit,
        ),
        cost_estimate=pl.CostEstimate(
            flops=int(flops), transcendentals=0, bytes_accessed=bytes_accessed),
    )(x_aug, w_aug, m_bf16)

    # Slice off row / lane padding, then trivial row-major reshape to NCHW.
    return out_pad[:R, :hw_out].reshape(N, Cout, h, w)


if __name__ == "__main__":
    key = jax.random.PRNGKey(0)
    k1, k2, k3 = jax.random.split(key, 3)

    # Small shapes consistent with the module: N=2, in_channels=4,
    # num_classes=6, 8x8 feature map upsampled to (h, w) = (16, 16).
    N, Cin, Hin, Win = 2, 4, 8, 8
    Cout = 6
    h, w = 16, 16

    x = jax.random.normal(k1, (N, Cin, Hin, Win), jnp.float32)
    weight = jax.random.normal(k2, (Cout, Cin, 1, 1), jnp.float32) * 0.1
    bias = jax.random.normal(k3, (Cout,), jnp.float32) * 0.1

    out = aux_head_forward(x, weight, bias, h, w)
    out = jax.block_until_ready(out)

    # Pure-JAX f32 reference (same math, plain XLA) for a sanity check.
    conv_ref = jnp.einsum('nchw,oc->nohw', x, weight.reshape(Cout, Cin)) \
        + bias[None, :, None, None]
    wy_ref = jnp.asarray(_bilinear_matrix_np(Hin, h))
    wx_ref = jnp.asarray(_bilinear_matrix_np(Win, w))
    ref = jnp.einsum('ah,nchw,bw->ncab', wy_ref, conv_ref, wx_ref)

    assert out.shape == (N, Cout, h, w)
    assert jnp.allclose(out, ref, atol=2e-2, rtol=2e-2), \
        float(jnp.max(jnp.abs(out - ref)))
    print("KERNEL_OK")
</pallas_src>

<mosaic_0001>
module attributes {stable_mosaic.version = 11 : i64} {
  func.func @_aux_head_kernel(%arg0: i32, %arg1: memref<9x64xbf16, #tpu.memory_space<vmem>>, %arg2: memref<16x9xbf16, #tpu.memory_space<vmem>>, %arg3: memref<64x256xbf16, #tpu.memory_space<vmem>>, %arg4: memref<16x256xf32, #tpu.memory_space<vmem>>) attributes {dimension_semantics = [#tpu.dimension_semantics<parallel>], iteration_bounds = array<i64: 1>, scalar_prefetch = 0 : i64, scratch_operands = 0 : i64, tpu.core_type = #tpu.core_type<tc>, window_params = [{pipeline_mode = #tpu.pipeline_mode<synchronous>, transform_indices = @transform_0, window_bounds = array<i64: 9, 64>}, {pipeline_mode = #tpu.pipeline_mode<synchronous>, transform_indices = @transform_1, window_bounds = array<i64: 16, 9>}, {transform_indices = @transform_2, window_bounds = array<i64: 64, 256>}, {transform_indices = @transform_3, window_bounds = array<i64: 16, 256>}]} {
    %c0 = arith.constant 0 : index
    %c0_0 = arith.constant 0 : index
    %0 = vector.load %arg1[%c0, %c0_0] : memref<9x64xbf16, #tpu.memory_space<vmem>>, vector<9x64xbf16>
    %c0_1 = arith.constant 0 : index
    %c0_2 = arith.constant 0 : index
    %1 = vector.load %arg3[%c0_1, %c0_2] : memref<64x256xbf16, #tpu.memory_space<vmem>>, vector<64x256xbf16>
    %cst = arith.constant dense<0.000000e+00> : vector<9x256xf32>
    %2 = tpu.matmul %0, %1, %cst {dimension_numbers = #tpu.dot_dimension_numbers<[1], [0], [0], [1], [0, 0, 1, 1], [], []>} : vector<9x64xbf16>, vector<64x256xbf16>, vector<9x256xf32> -> vector<9x256xf32>
    %c0_3 = arith.constant 0 : index
    %c0_4 = arith.constant 0 : index
    %3 = vector.load %arg2[%c0_3, %c0_4] : memref<16x9xbf16, #tpu.memory_space<vmem>>, vector<16x9xbf16>
    %4 = arith.truncf %2 : vector<9x256xf32> to vector<9x256xbf16>
    %cst_5 = arith.constant dense<0.000000e+00> : vector<16x256xf32>
    %5 = tpu.matmul %3, %4, %cst_5 {dimension_numbers = #tpu.dot_dimension_numbers<[1], [0], [0], [1], [0, 0, 1, 1], [], []>} : vector<16x9xbf16>, vector<9x256xbf16>, vector<16x256xf32> -> vector<16x256xf32>
    %c0_6 = arith.constant 0 : index
    %c0_7 = arith.constant 0 : index
    %6 = vector.load %arg4[%c0_6, %c0_7] : memref<16x256xf32, #tpu.memory_space<vmem>>, vector<16x256xf32>
    tpu.vector_store %arg4[%c0_6, %c0_7], %5 {strides = array<i32>} : memref<16x256xf32, #tpu.memory_space<vmem>>, vector<16x256xf32>,
    return
  }
  func.func @transform_0(%arg0: i32) -> (i32, i32) {
    %c0_i32 = arith.constant 0 : i32
    %c0_i32_0 = arith.constant 0 : i32
    %c0_i32_1 = arith.constant 0 : i32
    return %c0_i32, %c0_i32_0 : i32, i32
  }
  func.func @transform_1(%arg0: i32) -> (i32, i32) {
    %c0_i32 = arith.constant 0 : i32
    %c0_i32_0 = arith.constant 0 : i32
    %c0_i32_1 = arith.constant 0 : i32
    return %c0_i32, %c0_i32_0 : i32, i32
  }
  func.func @transform_2(%arg0: i32) -> (i32, i32) {
    %c0_i32 = arith.constant 0 : i32
    %c0_i32_0 = arith.constant 0 : i32
    return %c0_i32, %arg0 : i32, i32
  }
  func.func @transform_3(%arg0: i32) -> (i32, i32) {
    %c0_i32 = arith.constant 0 : i32
    %c0_i32_0 = arith.constant 0 : i32
    return %c0_i32, %arg0 : i32, i32
  }
}

</mosaic_0001>

<llo_original>
// kernel: tpu_custom_call.1
$region0: #{tpu_custom_call.1}
  #allocation0 [shape = 'u32[]', space=smem, size = 0x4, offset = 0x4, fixed_abs, tag = 'smem constant byte address 0x4 - core index']
  #allocation1 [shape = 'u32[144,128]{1,0:T(1,128)}', space=vmem, size = 0x12000, scoped, tag = 'internal scratch']
  %s0 = inlined_call_operand.hbm [shape: bf16[9,64], index: 0, kind: input, shape index: {}]
  %s1 = inlined_call_operand.hbm [shape: bf16[16,9], index: 1, kind: input, shape index: {}]
  %s2 = inlined_call_operand.hbm [shape: bf16[64,256], index: 2, kind: input, shape index: {}]
  %s3 = inlined_call_operand.hbm [shape: f32[16,256], index: 3, kind: output, shape index: {}]
  %s4 = sld [smem:[#allocation0]]
  $region34: #{tpu_custom_call.1} parent=0
    _
  %s6 = ssub.s32 1, %s4
  %s7 = scalar_select 0, %s6, %s4
  $region1: #{tpu_custom_call.1} parent=0
    #allocation2 [shape = 'u8[4096]{0}', space=vmem, size = 0x1000, scoped, tag = 'input window, operand 0, single buffered']
    #allocation3 [shape = 's32[1]{0}', space=sflag, size = 0x4, scoped, tag = 'scoped memory for tpu_custom_call.1']
    #allocation4 [shape = 's32[1]{0}', space=sflag, size = 0x4, scoped, tag = 'scoped memory for tpu_custom_call.1']
    #allocation5 [shape = 'u8[4096]{0}', space=vmem, size = 0x1000, scoped, tag = 'input window, operand 1, single buffered']
    #allocation6 [shape = 's32[1]{0}', space=sflag, size = 0x4, scoped, tag = 'scoped memory for tpu_custom_call.1']
    #allocation7 [shape = 'u8[32768]{0}', space=vmem, size = 0x8000, scoped, tag = 'input window, operand 2, single buffered']
    #allocation8 [shape = 'u8[16384]{0}', space=vmem, size = 0x4000, scoped, tag = 'output window, operand 0, single buffered']
    %8 = vsyncpa [#allocation3], 0
    %9 = vsyncpa [#allocation6], 0
    %10 = vsyncpa [#allocation4], 0
    // Predicated region
    $region2: #{tpu_custom_call.1} parent=1 // pred_check
      _
    $region3: #{tpu_custom_call.1} parent=1 // pred_check_branch
      %12 = sbr.rel (0) target = $region5
    $region4: #{tpu_custom_call.1} parent=1 // pred_region
      %s14 = ssub.s32 128, 128
      %15 = vsyncadd [#allocation3], %s14
      %s16 = sshll.u32 [#allocation2], 4
      %s17 = int_to_ptr.vmem [resolvable:$true] %s16
      %22 = dma.hbm_to_vmem [thread:$0]  %s0, 128, %s17, [#allocation3], 64, 64, 4
    $region5: #{tpu_custom_call.1} parent=1 // pred_fallthru
      _
    // Predicated region
    $region6: #{tpu_custom_call.1} parent=1 // pred_check
      _
    $region7: #{tpu_custom_call.1} parent=1 // pred_check_branch
      %24 = sbr.rel (0) target = $region9
    $region8: #{tpu_custom_call.1} parent=1 // pred_region
      %s26 = ssub.s32 128, 128
      %27 = vsyncadd [#allocation6], %s26
      %s28 = sshll.u32 [#allocation5], 4
      %s29 = int_to_ptr.vmem [resolvable:$true] %s28
      %34 = dma.hbm_to_vmem [thread:$0]  %s1, 128, %s29, [#allocation6], 64, 64, 4
    $region9: #{tpu_custom_call.1} parent=1 // pred_fallthru
      _
    // Predicated region
    $region10: #{tpu_custom_call.1} parent=1 // pred_check
      _
    $region11: #{tpu_custom_call.1} parent=1 // pred_check_branch
      %36 = sbr.rel (0) target = $region13
    $region12: #{tpu_custom_call.1} parent=1 // pred_region
      %s38 = ssub.s32 1024, 1024
      %39 = vsyncadd [#allocation6], %s38
      %s40 = sshll.u32 [#allocation7], 4
      %s41 = int_to_ptr.vmem [resolvable:$true] %s40
      %46 = dma.hbm_to_vmem [thread:$0]  %s2, 1024, %s41, [#allocation6], 128, 128, 8
    $region13: #{tpu_custom_call.1} parent=1 // pred_fallthru
      _
    // Predicated region
    $region14: #{tpu_custom_call.1} parent=1 // pred_check
      _
    $region15: #{tpu_custom_call.1} parent=1 // pred_check_branch
      %48 = sbr.rel (0) target = $region17
    $region16: #{tpu_custom_call.1} parent=1 // pred_region
      %49 = dma.done [#allocation3], 128
    $region17: #{tpu_custom_call.1} parent=1 // pred_fallthru
      _
    // Predicated region
    $region18: #{tpu_custom_call.1} parent=1 // pred_check
      _
    $region19: #{tpu_custom_call.1} parent=1 // pred_check_branch
      %51 = sbr.rel (0) target = $region21
    $region20: #{tpu_custom_call.1} parent=1 // pred_region
      %52 = dma.done [#allocation6], 128
    $region21: #{tpu_custom_call.1} parent=1 // pred_fallthru
      _
    // Predicated region
    $region22: #{tpu_custom_call.1} parent=1 // pred_check
      _
    $region23: #{tpu_custom_call.1} parent=1 // pred_check_branch
      %54 = sbr.rel (0) target = $region25
    $region24: #{tpu_custom_call.1} parent=1 // pred_region
      %55 = dma.done [#allocation6], 1024
    $region25: #{tpu_custom_call.1} parent=1 // pred_fallthru
      _
    %v57 = vld [vmem:[#allocation2] sm:$0xf]
    %v58 = vld [vmem:[#allocation2 + $0x4] sm:$0x1]
    %v59 = vld [vmem:[#allocation7] sm:$0xff]
    %v60 = vld [vmem:[#allocation7 + $0x8] sm:$0xff]
    %v61 = vld [vmem:[#allocation7 + $0x10] sm:$0xff]
    %v62 = vld [vmem:[#allocation7 + $0x18] sm:$0xff]
    %v63 = vld [vmem:[#allocation7 + $0x20] sm:$0xff]
    %v64 = vld [vmem:[#allocation7 + $0x28] sm:$0xff]
    %v65 = vld [vmem:[#allocation7 + $0x30] sm:$0xff]
    %v66 = vld [vmem:[#allocation7 + $0x38] sm:$0xff]
    %v69 = vunpack.c.l.b16 %v57
    %v70 = vunpack.c.l.b16 %v58
    %v71 = vpack.c.b16 %v70, %v69
    %v80 = vunpack.c.l.b16 %v59
    %v81 = vunpack.c.h.b16 %v59
    %v82 = vunpack.c.l.b16 %v60
    %v83 = vunpack.c.h.b16 %v60
    %v84 = vunpack.c.l.b16 %v61
    %v85 = vunpack.c.h.b16 %v61
    %v86 = vunpack.c.l.b16 %v62
    %v87 = vunpack.c.h.b16 %v62
    %v88 = vunpack.c.l.b16 %v63
    %v89 = vunpack.c.h.b16 %v63
    %v90 = vunpack.c.l.b16 %v64
    %v91 = vunpack.c.h.b16 %v64
    %v92 = vunpack.c.l.b16 %v65
    %v93 = vunpack.c.h.b16 %v65
    %v94 = vunpack.c.l.b16 %v66
    %v95 = vunpack.c.h.b16 %v66
    %v96 = vpack.c.b16 %v82, %v80
    %v97 = vpack.c.b16 %v83, %v81
    %v98 = vpack.c.b16 %v86, %v84
    %v99 = vpack.c.b16 %v87, %v85
    %v100 = vpack.c.b16 %v90, %v88
    %v101 = vpack.c.b16 %v91, %v89
    %v102 = vpack.c.b16 %v94, %v92
    %v103 = vpack.c.b16 %v95, %v93
    %vm112 = vcmask 523264
    %v114 = vsel %vm112, %v71, 0
    %116 = vmatprep.subr.bf16.mxu0 %v97
    %117 = vmatpush1.bf16.msra.mxu0 %v96
    %118 = vmatprep.subr.bf16.mxu0 %v99
    %119 = vmatpush1.bf16.msra.mxu0 %v98
    %120 = vmatprep.subr.bf16.mxu0 %v101
    %121 = vmatpush1.bf16.msra.mxu0 %v100
    %122 = vmatprep.subr.bf16.mxu0 %v103
    %123 = vmatpush1.bf16.msra.mxu0 %v102
    %124 = vmatprep.subr.bf16.mxu0 0
    %125 = vmatpush1.bf16.msra.mxu0 0
    %126 = vmatprep.subr.bf16.mxu0 0
    %127 = vmatpush1.bf16.msra.mxu0 0
    %128 = vmatprep.subr.bf16.mxu0 0
    %129 = vmatpush1.bf16.msra.mxu0 0
    %130 = vmatprep.subr.bf16.mxu0 0
    %131 = vmatpush1.bf16.msra.mxu0 0
    %132 = vmatprep.subr.bf16.mxu0 0
    %133 = vmatpush1.bf16.msra.mxu0 0
    %134 = vmatprep.subr.bf16.mxu0 0
    %135 = vmatpush1.bf16.msra.mxu0 0
    %136 = vmatprep.subr.bf16.mxu0 0
    %137 = vmatpush1.bf16.msra.mxu0 0
    %138 = vmatprep.subr.bf16.mxu0 0
    %139 = vmatpush1.bf16.msra.mxu0 0
    %140 = vmatprep.subr.bf16.mxu0 0
    %141 = vmatpush1.bf16.msra.mxu0 0
    %142 = vmatprep.subr.bf16.mxu0 0
    %143 = vmatpush1.bf16.msra.mxu0 0
    %144 = vmatprep.subr.bf16.mxu0 0
    %145 = vmatpush1.bf16.msra.mxu0 0
    %146 = vmatprep.subr.bf16.mxu0 0
    %147 = vmatpush1.bf16.msra.mxu0 0
    %148 = vmatprep.mubr.bf16.mxu0 0
    %149 = vmatmul.mubr.bf16.gmra.mrb[0].mxu0 %v114
    %v150 = vpop.f32.mrb[0].mxu0
    %v151 = vadd.f32 0.0, %v150
    %v152 = vpop.f32.mrb[0].mxu0
    %v153 = vadd.f32 0.0, %v152
    %v154 = vpop.f32.mrb[0].mxu0
    %v155 = vadd.f32 0.0, %v154
    %v156 = vpop.f32.mrb[0].mxu0
    %v157 = vadd.f32 0.0, %v156
    %158 = vdwg.mxu0
    %v159 = vld [vmem:[#allocation5] sm:$0xf]
    %v160 = vld [vmem:[#allocation5 + $0x4] sm:$0xf]
    %v161 = vpack.c.bf16 %v155, %v151
    %v162 = vpack.c.bf16 %v157, %v153
    %v165 = vunpack.c.l.b16 %v159
    %v166 = vunpack.c.l.b16 %v160
    %v167 = vpack.c.b16 %v166, %v165
    %vm168 = vcmask 72704
    %v170 = vsel %vm168, %v167, 0
    %vm172 = vcmask 1043456
    %vm173 = vcmask 1044480
    %v174 = vsel %vm172, 4294967295, 65535
    %v175 = vsel %vm173, %v174, 0
    %v177 = vand.u32 %v161, %v175
    %v180 = vand.u32 %v162, %v175
    %182 = vmatprep.subr.bf16.mxu0 %v180
    %183 = vmatpush1.bf16.msra.mxu0 %v177
    %184 = vmatprep.subr.bf16.mxu0 0
    %185 = vmatpush1.bf16.msra.mxu0 0
    %186 = vmatprep.subr.bf16.mxu0 0
    %187 = vmatpush1.bf16.msra.mxu0 0
    %188 = vmatprep.subr.bf16.mxu0 0
    %189 = vmatpush1.bf16.msra.mxu0 0
    %190 = vmatprep.subr.bf16.mxu0 0
    %191 = vmatpush1.bf16.msra.mxu0 0
    %192 = vmatprep.subr.bf16.mxu0 0
    %193 = vmatpush1.bf16.msra.mxu0 0
    %194 = vmatprep.subr.bf16.mxu0 0
    %195 = vmatpush1.bf16.msra.mxu0 0
    %196 = vmatprep.subr.bf16.mxu0 0
    %197 = vmatpush1.bf16.msra.mxu0 0
    %198 = vmatprep.subr.bf16.mxu0 0
    %199 = vmatpush1.bf16.msra.mxu0 0
    %200 = vmatprep.subr.bf16.mxu0 0
    %201 = vmatpush1.bf16.msra.mxu0 0
    %202 = vmatprep.subr.bf16.mxu0 0
    %203 = vmatpush1.bf16.msra.mxu0 0
    %204 = vmatprep.subr.bf16.mxu0 0
    %205 = vmatpush1.bf16.msra.mxu0 0
    %206 = vmatprep.subr.bf16.mxu0 0
    %207 = vmatpush1.bf16.msra.mxu0 0
    %208 = vmatprep.subr.bf16.mxu0 0
    %209 = vmatpush1.bf16.msra.mxu0 0
    %210 = vmatprep.subr.bf16.mxu0 0
    %211 = vmatpush1.bf16.msra.mxu0 0
    %212 = vmatprep.subr.bf16.mxu0 0
    %213 = vmatpush1.bf16.msra.mxu0 0
    %214 = vmatprep.mubr.bf16.mxu0 0
    %215 = vmatmul.mubr.bf16.gmra.mrb[0].mxu0 %v170
    %v216 = vpop.f32.mrb[0].mxu0
    %v217 = vadd.f32 0.0, %v216
    %v218 = vpop.f32.mrb[0].mxu0
    %v219 = vadd.f32 0.0, %v218
    %v220 = vpop.f32.mrb[0].mxu0
    %v221 = vadd.f32 0.0, %v220
    %v222 = vpop.f32.mrb[0].mxu0
    %v223 = vadd.f32 0.0, %v222
    %224 = vdwg.mxu0
    %225 = vst [vmem:[#allocation8] sm:$0xff] %v217
    %226 = vst [vmem:[#allocation8 + $0x8] sm:$0xff] %v219
    %227 = vst [vmem:[#allocation8 + $0x10] sm:$0xff] %v221
    %228 = vst [vmem:[#allocation8 + $0x18] sm:$0xff] %v223
    // Predicated region
    $region26: #{tpu_custom_call.1} parent=1 // pred_check
      _
    $region27: #{tpu_custom_call.1} parent=1 // pred_check_branch
      %230 = sbr.rel (0) target = $region29
    $region28: #{tpu_custom_call.1} parent=1 // pred_region
      %s232 = ssub.s32 512, 512
      %233 = vsyncadd [#allocation4], %s232
      %s234 = sshll.u32 [#allocation8], 4
      %s235 = int_to_ptr.vmem [resolvable:$true] %s234
      %240 = dma.vmem_to_hbm [thread:$0]  %s235, 512, %s3, [#allocation4], 256, 256, 16
    $region29: #{tpu_custom_call.1} parent=1 // pred_fallthru
      _
    // Predicated region
    $region30: #{tpu_custom_call.1} parent=1 // pred_check
      _
    $region31: #{tpu_custom_call.1} parent=1 // pred_check_branch
      %242 = sbr.rel (0) target = $region33
    $region32: #{tpu_custom_call.1} parent=1 // pred_region
      %243 = dma.done [#allocation4], 512
    $region33: #{tpu_custom_call.1} parent=1 // pred_fallthru
      _
    %244 = vsyncpa [#allocation3], 1
    %245 = vsyncpa [#allocation6], 1
    %246 = vsyncpa [#allocation4], 1

</llo_original>
